<compile_context>
chip_gen: v7x
topology: tpu7x:2x2x1
jax: 0.10.0
libtpu: 0.0.40
codegen_flags: <defaults>
</compile_context>

<pallas_src>
import functools

import jax
import jax.numpy as jnp
from jax import lax
from jax.experimental import pallas as pl
from jax.experimental.pallas import tpu as pltpu


def conv_block_kernel(x_ref, w_ref, shift_ref, ln_g_ref, ln_b_ref, keep_ref,
                      o_ref, *, kernel_size, tile_t, win_r, c_out, ln_eps):
    """One grid step = one (batch, time-tile) output block.

    x_ref    : (1, T_halo, C_in)   bf16, whole padded sequence of this batch
    w_ref    : (k, C_in, C_out_p)  bf16, conv weight with BN scale folded in
    shift_ref: (1, C_out_p)        f32, folded conv bias + BN shift
    ln_*_ref : (1, C_out_p)        f32, LayerNorm affine (zero-padded)
    keep_ref : (1, T_pad, 1)       f32, 1 = keep row, 0 = masked_fill(0)
    o_ref    : (1, tile_t, C_out_p)
    """
    start = pl.multiple_of(pl.program_id(1) * tile_t, tile_t)

    # Overlapping halo window straight out of the resident block
    # (no wrapper gather, no extra HBM pass).
    xw = x_ref[0, pl.ds(start, win_r), :]                  # (win_r, C_in) bf16

    # --- Conv1d('same', stride=1, dilation=1) as k shifted MXU matmuls with
    #     f32 accumulation; conv bias + BN scale/shift folded in the wrapper.
    acc = jnp.dot(xw[0:tile_t], w_ref[0], preferred_element_type=jnp.float32)
    for j in range(1, kernel_size):                        # static unroll
        acc += jnp.dot(xw[j:j + tile_t], w_ref[j],
                       preferred_element_type=jnp.float32)
    acc += shift_ref[...]                                  # folded bias + BN shift

    # --- ReLU activation.
    acc = jnp.maximum(acc, 0.0)

    # --- Dropout: identity in inference mode.
    # TODO(synk): training-mode dropout via pltpu.prng_seed / prng_random_bits.

    # --- LayerNorm over the real channel count (two-pass for accuracy).
    #     Padded channels are exactly zero going in, so sum / c_out is an
    #     exact mean; they are excluded from the variance via an iota mask.
    inv_c = 1.0 / c_out
    c_out_p = acc.shape[-1]
    mean = jnp.sum(acc, axis=-1, keepdims=True) * inv_c
    centered = acc - mean
    if c_out_p != c_out:
        cmask = (lax.broadcasted_iota(jnp.int32, (1, c_out_p), 1)
                 < c_out).astype(acc.dtype)
        centered_v = centered * cmask
    else:
        centered_v = centered
    var = jnp.sum(centered_v * centered_v, axis=-1, keepdims=True) * inv_c
    normed = centered * lax.rsqrt(var + ln_eps)

    # --- LN affine (zero-padded params keep pad channels at 0) + masked_fill.
    keep = keep_ref[0, pl.ds(start, tile_t), :]            # (tile_t, 1)
    o_ref[0] = ((normed * ln_g_ref[...] + ln_b_ref[...]) * keep).astype(o_ref.dtype)


def init_params(key, in_channels, out_channels, kernel_size):
    """Deterministic parameter init mirroring the PyTorch module's __init__."""
    k1, k2 = jax.random.split(key)
    gain = 5.0 / 3.0                               # calculate_gain('tanh')
    fan_in = in_channels * kernel_size
    fan_out = out_channels * kernel_size
    a = gain * (6.0 / (fan_in + fan_out)) ** 0.5   # xavier_uniform bound
    # PyTorch Conv1d weight layout is (C_out, C_in, k); store as (k, C_in, C_out).
    w_torch = jax.random.uniform(k1, (out_channels, in_channels, kernel_size),
                                 jnp.float32, minval=-a, maxval=a)
    w = jnp.transpose(w_torch, (2, 1, 0))
    bound = 1.0 / (fan_in ** 0.5)                  # default Conv1d bias init
    b = jax.random.uniform(k2, (out_channels,), jnp.float32,
                           minval=-bound, maxval=bound)
    return {
        "conv_w": w,
        "conv_b": b,
        # BatchNorm1d defaults (eval mode, fresh running stats).
        "bn_gamma": jnp.ones((out_channels,), jnp.float32),
        "bn_beta": jnp.zeros((out_channels,), jnp.float32),
        "bn_rm": jnp.zeros((out_channels,), jnp.float32),
        "bn_rv": jnp.ones((out_channels,), jnp.float32),
        "bn_eps": 1e-5,
        # LayerNorm defaults.
        "ln_gamma": jnp.ones((out_channels,), jnp.float32),
        "ln_beta": jnp.zeros((out_channels,), jnp.float32),
        "ln_eps": 1e-5,
    }


def _round_up(v, m):
    return ((v + m - 1) // m) * m


def conv_block_forward(x, params, mask=None, *, tile_t=512,
                       mxu_dtype=jnp.bfloat16, out_dtype=None,
                       trim_output=True, vmem_limit_mb=64):
    """x: (B, T, C_in) float32; mask: optional (B, T) bool (True = zero out).

    Returns (B, T, C_out) in `out_dtype` (defaults to x.dtype).  On v5e set
    out_dtype=jnp.bfloat16 if downstream tolerates it; set trim_output=False
    if the consumer accepts the padded (T_pad, C_out_p) layout (saves a full
    extra output pass through HBM).
    """
    B, T, C_in = x.shape
    w = params["conv_w"]                                    # (k, C_in, C_out)
    k, _, C_out = w.shape
    assert k % 2 == 1, "'same' shifted-matmul scheme requires odd kernel_size"
    pad = (k - 1) // 2
    out_dtype = x.dtype if out_dtype is None else out_dtype

    # --- fold conv bias + BatchNorm (eval mode) into weight / shift.
    bn_scale = params["bn_gamma"] * lax.rsqrt(params["bn_rv"] + params["bn_eps"])
    bn_shift = params["bn_beta"] - params["bn_rm"] * bn_scale
    w_f = w * bn_scale[None, None, :]
    shift = bn_shift + params["conv_b"] * bn_scale

    # --- lane-dense channel padding (multiple of 128 output channels).
    C_out_p = _round_up(C_out, 128)
    pc = C_out_p - C_out
    w_f = jnp.pad(w_f, ((0, 0), (0, 0), (0, pc))).astype(mxu_dtype)
    shift = jnp.pad(shift, (0, pc)).reshape(1, C_out_p).astype(jnp.float32)
    ln_g = jnp.pad(params["ln_gamma"], (0, pc)).reshape(1, C_out_p).astype(jnp.float32)
    ln_b = jnp.pad(params["ln_beta"], (0, pc)).reshape(1, C_out_p).astype(jnp.float32)

    # --- time tiling.  Default 512 targets v5e/v6e (128 MiB VMEM); the
    #     working-set estimate shrinks tile_t so the per-step footprint stays
    #     ~<=32 MiB for v7x's 64 MiB VMEM.
    tile_t = max(8, min(_round_up(T, 8), _round_up(tile_t, 8)))
    out_b = jnp.dtype(out_dtype).itemsize
    const_vmem = 2 * (k * C_in * C_out_p * 2 + 3 * C_out_p * 4)
    resident_vmem = 2 * (_round_up(T + 2 * pad, 8) + 8) * (C_in * 2 + 4)
    budget = max(2 << 20, (32 << 20) - const_vmem - resident_vmem)
    while tile_t > 16 and tile_t * C_out_p * (2 * out_b + 6 * 4) > budget:
        tile_t = max(16, _round_up(tile_t // 2, 8))
    nT = pl.cdiv(T, tile_t)
    if B * nT == 1 and T > 8:          # give both v7x TensorCores work at B == 1
        tile_t = _round_up(pl.cdiv(T, 2), 8)
        nT = pl.cdiv(T, tile_t)
    T_pad = nT * tile_t
    win_r = _round_up(tile_t + 2 * pad, 8)   # sublane-aligned in-kernel window
    T_halo = (nT - 1) * tile_t + win_r

    # --- single fused pad + bf16 cast; NO halo-window gather materialized.
    # TODO(synk): for very long sequences (T * C_in too large for VMEM) switch
    # the x block to a manual windowed DMA (memory_space=pl.ANY, double-buffer).
    xp = jnp.pad(x, ((0, 0), (pad, T_halo - pad - T), (0, 0))).astype(mxu_dtype)

    # keep = 1 where the row is kept (valid & not masked), else 0; resident
    # per batch (one tiny DMA per batch instead of one per grid step).
    if mask is None:
        keep = jnp.ones((B, T), jnp.float32)
    else:
        keep = 1.0 - mask.astype(jnp.float32)
    keep = jnp.pad(keep, ((0, 0), (0, T_pad - T))).reshape(B, T_pad, 1)

    kernel = functools.partial(conv_block_kernel, kernel_size=k, tile_t=tile_t,
                               win_r=win_r, c_out=C_out,
                               ln_eps=float(params["ln_eps"]))

    out = pl.pallas_call(
        kernel,
        out_shape=jax.ShapeDtypeStruct((B, T_pad, C_out_p), out_dtype),
        grid_spec=pltpu.PrefetchScalarGridSpec(
            num_scalar_prefetch=0,
            grid=(B, nT),
            in_specs=[
                # whole padded sequence of batch b -> fetched once per batch,
                # re-used across all time tiles (index map ignores t).
                pl.BlockSpec((1, T_halo, C_in), lambda b, t: (b, 0, 0)),
                # constants: index maps never change -> fetched once.
                pl.BlockSpec((k, C_in, C_out_p), lambda b, t: (0, 0, 0)),
                pl.BlockSpec((1, C_out_p), lambda b, t: (0, 0)),
                pl.BlockSpec((1, C_out_p), lambda b, t: (0, 0)),
                pl.BlockSpec((1, C_out_p), lambda b, t: (0, 0)),
                # keep factor, resident per batch.
                pl.BlockSpec((1, T_pad, 1), lambda b, t: (b, 0, 0)),
            ],
            out_specs=pl.BlockSpec((1, tile_t, C_out_p), lambda b, t: (b, t, 0)),
        ),
        compiler_params=pltpu.CompilerParams(
            dimension_semantics=("parallel", "parallel"),
            vmem_limit_bytes=vmem_limit_mb * 1024 * 1024),
    )(xp, w_f, shift, ln_g, ln_b, keep)

    if trim_output:
        out = out[:, :T, :C_out]
    return out


def conv_block_reference(x, params, mask=None, mxu_dtype=jnp.bfloat16):
    """Plain-JAX reference using the same bf16 input/weight quantization."""
    w = params["conv_w"]
    k, _, C_out = w.shape
    pad = (k - 1) // 2
    bn_scale = params["bn_gamma"] * lax.rsqrt(params["bn_rv"] + params["bn_eps"])
    bn_shift = params["bn_beta"] - params["bn_rm"] * bn_scale
    w_f = (w * bn_scale[None, None, :]).astype(mxu_dtype).astype(jnp.float32)
    shift = bn_shift + params["conv_b"] * bn_scale
    xq = x.astype(mxu_dtype).astype(jnp.float32)
    B, T, _ = x.shape
    xpad = jnp.pad(xq, ((0, 0), (pad, pad), (0, 0)))
    y = jnp.zeros((B, T, C_out), jnp.float32)
    for j in range(k):
        y = y + jnp.einsum("btc,co->bto", xpad[:, j:j + T, :], w_f[j],
                           preferred_element_type=jnp.float32)
    y = y + shift[None, None, :]
    y = jnp.maximum(y, 0.0)                           # ReLU; dropout = identity
    mean = jnp.mean(y, axis=-1, keepdims=True)
    var = jnp.mean((y - mean) ** 2, axis=-1, keepdims=True)
    y = (y - mean) * lax.rsqrt(var + params["ln_eps"])
    y = y * params["ln_gamma"] + params["ln_beta"]
    if mask is not None:
        y = jnp.where(mask[:, :, None], 0.0, y)
    return y


if __name__ == "__main__":
    key = jax.random.PRNGKey(0)
    k_x, k_p = jax.random.split(key)

    B, T, C_in, C_out, K = 2, 16, 8, 16, 5

    x = jax.random.normal(k_x, (B, T, C_in), jnp.float32)
    params = init_params(k_p, C_in, C_out, K)

    # Mask: pad positions (True) get zeroed, like masked_fill(mask.unsqueeze(-1), 0).
    lengths = jnp.array([16, 12], jnp.int32)
    mask = jnp.arange(T)[None, :] >= lengths[:, None]

    out = conv_block_forward(x, params, mask=mask)
    jax.block_until_ready(out)

    ref = conv_block_reference(x, params, mask=mask)

    assert out.shape == (B, T, C_out)
    assert bool(jnp.all(jnp.isfinite(out)))
    assert bool(jnp.all(out[1, 12:, :] == 0.0))        # masked rows exactly zero
    assert bool(jnp.allclose(out, ref, atol=1e-2, rtol=1e-2)), \
        float(jnp.max(jnp.abs(out - ref)))
    print("KERNEL_OK")
</pallas_src>

<mosaic_0001>
module attributes {stable_mosaic.version = 11 : i64} {
  func.func @conv_block_kernel(%arg0: i32, %arg1: i32, %arg2: memref<1x24x8xbf16, #tpu.memory_space<vmem>>, %arg3: memref<5x8x128xbf16, #tpu.memory_space<vmem>>, %arg4: memref<1x128xf32, #tpu.memory_space<vmem>>, %arg5: memref<1x128xf32, #tpu.memory_space<vmem>>, %arg6: memref<1x128xf32, #tpu.memory_space<vmem>>, %arg7: memref<1x16x1xf32, #tpu.memory_space<vmem>>, %arg8: memref<1x16x128xf32, #tpu.memory_space<vmem>>) attributes {dimension_semantics = [#tpu.dimension_semantics<parallel>, #tpu.dimension_semantics<parallel>], iteration_bounds = array<i64: 2, 1>, scalar_prefetch = 0 : i64, scratch_operands = 0 : i64, tpu.core_type = #tpu.core_type<tc>, window_params = [{transform_indices = @transform_0, window_bounds = array<i64: 1, 24, 8>}, {pipeline_mode = #tpu.pipeline_mode<synchronous>, transform_indices = @transform_1, window_bounds = array<i64: 5, 8, 128>}, {pipeline_mode = #tpu.pipeline_mode<synchronous>, transform_indices = @transform_2, window_bounds = array<i64: 1, 128>}, {pipeline_mode = #tpu.pipeline_mode<synchronous>, transform_indices = @transform_3, window_bounds = array<i64: 1, 128>}, {pipeline_mode = #tpu.pipeline_mode<synchronous>, transform_indices = @transform_4, window_bounds = array<i64: 1, 128>}, {transform_indices = @transform_5, window_bounds = array<i64: 1, 16, 1>}, {transform_indices = @transform_6, window_bounds = array<i64: 1, 16, 128>}]} {
    %c16_i32 = arith.constant 16 : i32
    %0 = arith.muli %arg1, %c16_i32 : i32
    %1 = tpu.assume_multiple %0, 16 : i32
    %c0 = arith.constant 0 : index
    %2 = arith.index_cast %1 : i32 to index
    %c0_0 = arith.constant 0 : index
    %3 = vector.load %arg2[%c0, %2, %c0_0] : memref<1x24x8xbf16, #tpu.memory_space<vmem>>, vector<1x24x8xbf16>
    %4 = vector.shape_cast %3 : vector<1x24x8xbf16> to vector<24x8xbf16>
    %5 = vector.extract_strided_slice %4 {offsets = [0, 0], sizes = [16, 8], strides = [1, 1]} : vector<24x8xbf16> to vector<16x8xbf16>
    %c0_1 = arith.constant 0 : index
    %c0_2 = arith.constant 0 : index
    %c0_3 = arith.constant 0 : index
    %6 = vector.load %arg3[%c0_1, %c0_2, %c0_3] : memref<5x8x128xbf16, #tpu.memory_space<vmem>>, vector<1x8x128xbf16>
    %7 = vector.shape_cast %6 : vector<1x8x128xbf16> to vector<8x128xbf16>
    %cst = arith.constant dense<0.000000e+00> : vector<16x128xf32>
    %8 = tpu.matmul %5, %7, %cst {dimension_numbers = #tpu.dot_dimension_numbers<[1], [0], [0], [1], [0, 0, 1, 1], [], []>} : vector<16x8xbf16>, vector<8x128xbf16>, vector<16x128xf32> -> vector<16x128xf32>
    %9 = vector.extract_strided_slice %4 {offsets = [1, 0], sizes = [16, 8], strides = [1, 1]} : vector<24x8xbf16> to vector<16x8xbf16>
    %c1 = arith.constant 1 : index
    %c0_4 = arith.constant 0 : index
    %c0_5 = arith.constant 0 : index
    %10 = vector.load %arg3[%c1, %c0_4, %c0_5] : memref<5x8x128xbf16, #tpu.memory_space<vmem>>, vector<1x8x128xbf16>
    %11 = vector.shape_cast %10 : vector<1x8x128xbf16> to vector<8x128xbf16>
    %cst_6 = arith.constant dense<0.000000e+00> : vector<16x128xf32>
    %12 = tpu.matmul %9, %11, %cst_6 {dimension_numbers = #tpu.dot_dimension_numbers<[1], [0], [0], [1], [0, 0, 1, 1], [], []>} : vector<16x8xbf16>, vector<8x128xbf16>, vector<16x128xf32> -> vector<16x128xf32>
    %13 = arith.addf %8, %12 : vector<16x128xf32>
    %14 = vector.extract_strided_slice %4 {offsets = [2, 0], sizes = [16, 8], strides = [1, 1]} : vector<24x8xbf16> to vector<16x8xbf16>
    %c2 = arith.constant 2 : index
    %c0_7 = arith.constant 0 : index
    %c0_8 = arith.constant 0 : index
    %15 = vector.load %arg3[%c2, %c0_7, %c0_8] : memref<5x8x128xbf16, #tpu.memory_space<vmem>>, vector<1x8x128xbf16>
    %16 = vector.shape_cast %15 : vector<1x8x128xbf16> to vector<8x128xbf16>
    %cst_9 = arith.constant dense<0.000000e+00> : vector<16x128xf32>
    %17 = tpu.matmul %14, %16, %cst_9 {dimension_numbers = #tpu.dot_dimension_numbers<[1], [0], [0], [1], [0, 0, 1, 1], [], []>} : vector<16x8xbf16>, vector<8x128xbf16>, vector<16x128xf32> -> vector<16x128xf32>
    %18 = arith.addf %13, %17 : vector<16x128xf32>
    %19 = vector.extract_strided_slice %4 {offsets = [3, 0], sizes = [16, 8], strides = [1, 1]} : vector<24x8xbf16> to vector<16x8xbf16>
    %c3 = arith.constant 3 : index
    %c0_10 = arith.constant 0 : index
    %c0_11 = arith.constant 0 : index
    %20 = vector.load %arg3[%c3, %c0_10, %c0_11] : memref<5x8x128xbf16, #tpu.memory_space<vmem>>, vector<1x8x128xbf16>
    %21 = vector.shape_cast %20 : vector<1x8x128xbf16> to vector<8x128xbf16>
    %cst_12 = arith.constant dense<0.000000e+00> : vector<16x128xf32>
    %22 = tpu.matmul %19, %21, %cst_12 {dimension_numbers = #tpu.dot_dimension_numbers<[1], [0], [0], [1], [0, 0, 1, 1], [], []>} : vector<16x8xbf16>, vector<8x128xbf16>, vector<16x128xf32> -> vector<16x128xf32>
    %23 = arith.addf %18, %22 : vector<16x128xf32>
    %24 = vector.extract_strided_slice %4 {offsets = [4, 0], sizes = [16, 8], strides = [1, 1]} : vector<24x8xbf16> to vector<16x8xbf16>
    %c4 = arith.constant 4 : index
    %c0_13 = arith.constant 0 : index
    %c0_14 = arith.constant 0 : index
    %25 = vector.load %arg3[%c4, %c0_13, %c0_14] : memref<5x8x128xbf16, #tpu.memory_space<vmem>>, vector<1x8x128xbf16>
    %26 = vector.shape_cast %25 : vector<1x8x128xbf16> to vector<8x128xbf16>
    %cst_15 = arith.constant dense<0.000000e+00> : vector<16x128xf32>
    %27 = tpu.matmul %24, %26, %cst_15 {dimension_numbers = #tpu.dot_dimension_numbers<[1], [0], [0], [1], [0, 0, 1, 1], [], []>} : vector<16x8xbf16>, vector<8x128xbf16>, vector<16x128xf32> -> vector<16x128xf32>
    %28 = arith.addf %23, %27 : vector<16x128xf32>
    %c0_16 = arith.constant 0 : index
    %c0_17 = arith.constant 0 : index
    %29 = vector.load %arg4[%c0_16, %c0_17] : memref<1x128xf32, #tpu.memory_space<vmem>>, vector<1x128xf32>
    %30 = vector.broadcast %29 : vector<1x128xf32> to vector<16x128xf32>
    %31 = arith.addf %28, %30 : vector<16x128xf32>
    %cst_18 = arith.constant 0.000000e+00 : f32
    %32 = vector.broadcast %cst_18 : f32 to vector<16x128xf32>
    %33 = arith.maximumf %31, %32 : vector<16x128xf32>
    %cst_19 = arith.constant dense<0.000000e+00> : vector<16xf32>
    %34 = vector.multi_reduction <add>, %33, %cst_19 [1] : vector<16x128xf32> to vector<16xf32>
    %35 = vector.shape_cast %34 : vector<16xf32> to vector<16x1xf32>
    %cst_20 = arith.constant 6.250000e-02 : f32
    %36 = vector.broadcast %cst_20 : f32 to vector<16x1xf32>
    %37 = arith.mulf %35, %36 : vector<16x1xf32>
    %38 = vector.broadcast %37 : vector<16x1xf32> to vector<16x128xf32>
    %39 = arith.subf %33, %38 : vector<16x128xf32>
    %40 = tpu.iota {dimensions = array<i32: 1>} : vector<1x128xi32>
    %c16_i32_21 = arith.constant 16 : i32
    %41 = vector.broadcast %c16_i32_21 : i32 to vector<1x128xi32>
    %42 = arith.cmpi slt, %40, %41 : vector<1x128xi32>
    %43 = arith.extui %42 : vector<1x128xi1> to vector<1x128xi32>
    %44 = arith.sitofp %43 : vector<1x128xi32> to vector<1x128xf32>
    %45 = vector.broadcast %44 : vector<1x128xf32> to vector<16x128xf32>
    %46 = arith.mulf %39, %45 : vector<16x128xf32>
    %47 = arith.mulf %46, %46 : vector<16x128xf32>
    %cst_22 = arith.constant dense<0.000000e+00> : vector<16xf32>
    %48 = vector.multi_reduction <add>, %47, %cst_22 [1] : vector<16x128xf32> to vector<16xf32>
    %49 = vector.shape_cast %48 : vector<16xf32> to vector<16x1xf32>
    %cst_23 = arith.constant 6.250000e-02 : f32
    %50 = vector.broadcast %cst_23 : f32 to vector<16x1xf32>
    %51 = arith.mulf %49, %50 : vector<16x1xf32>
    %cst_24 = arith.constant 9.99999974E-6 : f32
    %52 = vector.broadcast %cst_24 : f32 to vector<16x1xf32>
    %53 = arith.addf %51, %52 : vector<16x1xf32>
    %54 = math.rsqrt %53 : vector<16x1xf32>
    %55 = vector.broadcast %54 : vector<16x1xf32> to vector<16x128xf32>
    %56 = arith.mulf %39, %55 : vector<16x128xf32>
    %c0_25 = arith.constant 0 : index
    %57 = arith.index_cast %1 : i32 to index
    %c0_26 = arith.constant 0 : index
    %58 = vector.load %arg7[%c0_25, %57, %c0_26] : memref<1x16x1xf32, #tpu.memory_space<vmem>>, vector<1x16x1xf32>
    %59 = vector.shape_cast %58 : vector<1x16x1xf32> to vector<16x1xf32>
    %c0_27 = arith.constant 0 : index
    %c0_28 = arith.constant 0 : index
    %60 = vector.load %arg5[%c0_27, %c0_28] : memref<1x128xf32, #tpu.memory_space<vmem>>, vector<1x128xf32>
    %61 = vector.broadcast %60 : vector<1x128xf32> to vector<16x128xf32>
    %62 = arith.mulf %56, %61 : vector<16x128xf32>
    %c0_29 = arith.constant 0 : index
    %c0_30 = arith.constant 0 : index
    %63 = vector.load %arg6[%c0_29, %c0_30] : memref<1x128xf32, #tpu.memory_space<vmem>>, vector<1x128xf32>
    %64 = vector.broadcast %63 : vector<1x128xf32> to vector<16x128xf32>
    %65 = arith.addf %62, %64 : vector<16x128xf32>
    %66 = vector.broadcast %59 : vector<16x1xf32> to vector<16x128xf32>
    %67 = arith.mulf %65, %66 : vector<16x128xf32>
    %c0_31 = arith.constant 0 : index
    %c0_32 = arith.constant 0 : index
    %c0_33 = arith.constant 0 : index
    %68 = vector.load %arg8[%c0_31, %c0_32, %c0_33] : memref<1x16x128xf32, #tpu.memory_space<vmem>>, vector<1x16x128xf32>
    %69 = vector.shape_cast %68 : vector<1x16x128xf32> to vector<16x128xf32>
    %70 = vector.shape_cast %67 : vector<16x128xf32> to vector<1x16x128xf32>
    tpu.vector_store %arg8[%c0_31, %c0_32, %c0_33], %70 {strides = array<i32>} : memref<1x16x128xf32, #tpu.memory_space<vmem>>, vector<1x16x128xf32>,
    return
  }
  func.func @transform_0(%arg0: i32, %arg1: i32) -> (i32, i32, i32) {
    %c0_i32 = arith.constant 0 : i32
    %c0_i32_0 = arith.constant 0 : i32
    %c0_i32_1 = arith.constant 0 : i32
    return %arg0, %c0_i32, %c0_i32_0 : i32, i32, i32
  }
  func.func @transform_1(%arg0: i32, %arg1: i32) -> (i32, i32, i32) {
    %c0_i32 = arith.constant 0 : i32
    %c0_i32_0 = arith.constant 0 : i32
    %c0_i32_1 = arith.constant 0 : i32
    %c0_i32_2 = arith.constant 0 : i32
    return %c0_i32, %c0_i32_0, %c0_i32_1 : i32, i32, i32
  }
  func.func @transform_2(%arg0: i32, %arg1: i32) -> (i32, i32) {
    %c0_i32 = arith.constant 0 : i32
    %c0_i32_0 = arith.constant 0 : i32
    %c0_i32_1 = arith.constant 0 : i32
    return %c0_i32, %c0_i32_0 : i32, i32
  }
  func.func @transform_3(%arg0: i32, %arg1: i32) -> (i32, i32) {
    %c0_i32 = arith.constant 0 : i32
    %c0_i32_0 = arith.constant 0 : i32
    %c0_i32_1 = arith.constant 0 : i32
    return %c0_i32, %c0_i32_0 : i32, i32
  }
  func.func @transform_4(%arg0: i32, %arg1: i32) -> (i32, i32) {
    %c0_i32 = arith.constant 0 : i32
    %c0_i32_0 = arith.constant 0 : i32
    %c0_i32_1 = arith.constant 0 : i32
    return %c0_i32, %c0_i32_0 : i32, i32
  }
  func.func @transform_5(%arg0: i32, %arg1: i32) -> (i32, i32, i32) {
    %c0_i32 = arith.constant 0 : i32
    %c0_i32_0 = arith.constant 0 : i32
    %c0_i32_1 = arith.constant 0 : i32
    return %arg0, %c0_i32, %c0_i32_0 : i32, i32, i32
  }
  func.func @transform_6(%arg0: i32, %arg1: i32) -> (i32, i32, i32) {
    %c0_i32 = arith.constant 0 : i32
    %c0_i32_0 = arith.constant 0 : i32
    return %arg0, %arg1, %c0_i32 : i32, i32, i32
  }
}

</mosaic_0001>

<llo_original>
// kernel: tpu_custom_call.1
$region0: #{tpu_custom_call.1}
  #allocation0 [shape = 'u32[]', space=smem, size = 0x4, offset = 0x4, fixed_abs, tag = 'smem constant byte address 0x4 - core index']
  #allocation1 [shape = 'u32[144,128]{1,0:T(1,128)}', space=vmem, size = 0x12000, scoped, tag = 'internal scratch']
  %s0 = inlined_call_operand.hbm [shape: bf16[2,24,8], index: 0, kind: input, shape index: {}]
  %s1 = inlined_call_operand.hbm [shape: bf16[5,8,128], index: 1, kind: input, shape index: {}]
  %s2 = inlined_call_operand.hbm [shape: f32[1,128], index: 2, kind: input, shape index: {}]
  %s3 = inlined_call_operand.hbm [shape: f32[1,128], index: 3, kind: input, shape index: {}]
  %s4 = inlined_call_operand.hbm [shape: f32[1,128], index: 4, kind: input, shape index: {}]
  %s5 = inlined_call_operand.hbm [shape: f32[2,16,1], index: 5, kind: input, shape index: {}]
  %s6 = inlined_call_operand.hbm [shape: f32[2,16,128], index: 6, kind: output, shape index: {}]
  %s7 = sld [smem:[#allocation0]]
  $region81: #{tpu_custom_call.1} parent=0
    _
  %s9 = ssub.s32 1, %s7
  %s10 = scalar_select 0, %s9, %s7
  $region1: #{tpu_custom_call.1} parent=0
    #allocation2 [shape = 'u8[12288]{0}', space=vmem, size = 0x3000, scoped, tag = 'input window, operand 0']
    #allocation3 [shape = 's32[2]{0}', space=sflag, size = 0x8, scoped, tag = 'scoped memory for tpu_custom_call.1']
    #allocation4 [shape = 's32[2]{0}', space=sflag, size = 0x8, scoped, tag = 'scoped memory for tpu_custom_call.1']
    #allocation5 [shape = 'u8[10240]{0}', space=vmem, size = 0x2800, scoped, tag = 'input window, operand 1, single buffered']
    #allocation6 [shape = 's32[1]{0}', space=sflag, size = 0x4, scoped, tag = 'scoped memory for tpu_custom_call.1']
    #allocation7 [shape = 'u8[512]{0}', space=vmem, size = 0x400, scoped, tag = 'input window, operand 2, single buffered']
    #allocation8 [shape = 'u8[512]{0}', space=vmem, size = 0x400, scoped, tag = 'input window, operand 3, single buffered']
    #allocation9 [shape = 's32[1]{0}', space=sflag, size = 0x4, scoped, tag = 'scoped memory for tpu_custom_call.1']
    #allocation10 [shape = 'u8[512]{0}', space=vmem, size = 0x400, scoped, tag = 'input window, operand 4, single buffered']
    #allocation11 [shape = 'u8[16384]{0}', space=vmem, size = 0x4000, scoped, tag = 'input window, operand 5']
    #allocation12 [shape = 's32[2]{0}', space=sflag, size = 0x8, scoped, tag = 'scoped memory for tpu_custom_call.1']
    #allocation13 [shape = 'u8[16384]{0}', space=vmem, size = 0x4000, scoped, tag = 'output window, operand 0']
    %11 = vsyncpa [#allocation3], 0
    %s12 = scalar_lea.sflag [#allocation3], 1
    %13 = vsyncpa %s12, 0
    %14 = vsyncpa [#allocation6], 0
    %15 = vsyncpa [#allocation9], 0
    %16 = vsyncpa [#allocation12], 0
    %s17 = scalar_lea.sflag [#allocation12], 1
    %18 = vsyncpa %s17, 0
    %19 = vsyncpa [#allocation4], 0
    %s20 = scalar_lea.sflag [#allocation4], 1
    %21 = vsyncpa %s20, 0
    loop: start=0, step=1, limit=4
    $region2: #{tpu_custom_call.1} parent=1 // loop_pre_header
      _
    $region3: #{tpu_custom_call.1} parent=1 // loop_header
      %s23 = sphi 0, %s27
      %p24 = scmp.ge.s32.totalorder %s23, 4
      %s30 = sphi 0, %s42
      %s31 = sphi 0, %s38
      %s32 = sphi 0, %s30
      %s33 = sphi 0, %s31
      %s34 = sphi 0, %s32
      %s35 = sphi 0, %s33
      %s45 = sphi 0, %s47
      %s48 = sphi 0, %s45
      %s49 = sphi 0, %s48
      %s65 = sphi 0, %s49
      %s69 = sphi 0, %s69
      %s71 = sphi 0, %s69
      %s72 = sphi 0, %s71
      %s86 = sphi 0, %s72
      %s90 = sphi 0, %s90
      %s92 = sphi 0, %s90
      %s93 = sphi 0, %s92
      %s107 = sphi 0, %s93
      %s111 = sphi 0, %s111
      %s113 = sphi 0, %s111
      %s114 = sphi 0, %s113
      %s128 = sphi 0, %s114
      %s132 = sphi 0, %s132
      %s134 = sphi 0, %s132
      %s135 = sphi 0, %s134
      %s149 = sphi 0, %s135
      %s155 = sphi 0, %s157
      %s158 = sphi 0, %s155
      %s159 = sphi 0, %s158
      %s175 = sphi 0, %s159
      %s183 = sphi 0, %s185
      %s186 = sphi 0, %s183
      %s187 = sphi 0, %s186
      %s203 = sphi 0, %s187
    $region4: #{tpu_custom_call.1} parent=1 // loop_header_branch
      %26 = sbr.rel (%p24) target = $region8
    $region5: #{tpu_custom_call.1} parent=1 // loop_body
      %s28 = ssub.s32 %s23, 1
      %s29 = ssub.s32 %s23, 2
      %s36 = sadd.s32 1, %s31
      %p37 = scmp.ge.s32.totalorder %s36, 1
      %s38 = scalar_select %p37, 0, %s36
      %s39 = sadd.s32 1, %s30
      %s40 = scalar_select %p37, %s39, %s30
      %p41 = scmp.ge.s32.totalorder %s40, 2
      %s42 = scalar_select %p41, 0, %s40
      %s43 = ssub.s32 %s30, %s42
      %p44 = scmp.eq.s32.totalorder %s43, 0
      %s46 = sadd.s32 %s45, 1
      %s47 = scalar_select %p44, %s45, %s46
      %p50 = pneg %p44
      %p51 = scmp.eq.s32.totalorder %s23, 1
      %p52 = por %p50, %p51
      %p53 = scmp.ne.s32.totalorder %s45, %s48
      %p54 = scmp.eq.s32.totalorder %s23, 0
      %p55 = por %p53, %p54
      %p56 = scmp.ne.s32.totalorder %s45, %s48
      %p57 = scmp.eq.s32.totalorder %s28, 1
      %p58 = por %p56, %p57
      %p59 = scmp.ne.s32.totalorder %s48, %s49
      %p60 = scmp.eq.s32.totalorder %s28, 0
      %p61 = por %p59, %p60
      %p62 = scmp.ne.s32.totalorder %s48, %s49
      %p63 = scmp.eq.s32.totalorder %s29, 1
      %p64 = por %p62, %p63
      %p66 = scmp.ne.s32.totalorder %s49, %s65
      %p67 = scmp.eq.s32.totalorder %s29, 0
      %p68 = por %p66, %p67
      %s70 = sadd.s32 %s69, 1
      %p73 = scmp.eq.s32.totalorder %s23, 1
      %p74 = scmp.ne.s32.totalorder %s69, %s71
      %p75 = scmp.eq.s32.totalorder %s23, 0
      %p76 = por %p74, %p75
      %p77 = scmp.ne.s32.totalorder %s69, %s71
      %p78 = scmp.eq.s32.totalorder %s28, 1
      %p79 = por %p77, %p78
      %p80 = scmp.ne.s32.totalorder %s71, %s72
      %p81 = scmp.eq.s32.totalorder %s28, 0
      %p82 = por %p80, %p81
      %p83 = scmp.ne.s32.totalorder %s71, %s72
      %p84 = scmp.eq.s32.totalorder %s29, 1
      %p85 = por %p83, %p84
      %p87 = scmp.ne.s32.totalorder %s72, %s86
      %p88 = scmp.eq.s32.totalorder %s29, 0
      %p89 = por %p87, %p88
      %s91 = sadd.s32 %s90, 1
      %p94 = scmp.eq.s32.totalorder %s23, 1
      %p95 = scmp.ne.s32.totalorder %s90, %s92
      %p96 = scmp.eq.s32.totalorder %s23, 0
      %p97 = por %p95, %p96
      %p98 = scmp.ne.s32.totalorder %s90, %s92
      %p99 = scmp.eq.s32.totalorder %s28, 1
      %p100 = por %p98, %p99
      %p101 = scmp.ne.s32.totalorder %s92, %s93
      %p102 = scmp.eq.s32.totalorder %s28, 0
      %p103 = por %p101, %p102
      %p104 = scmp.ne.s32.totalorder %s92, %s93
      %p105 = scmp.eq.s32.totalorder %s29, 1
      %p106 = por %p104, %p105
      %p108 = scmp.ne.s32.totalorder %s93, %s107
      %p109 = scmp.eq.s32.totalorder %s29, 0
      %p110 = por %p108, %p109
      %s112 = sadd.s32 %s111, 1
      %p115 = scmp.eq.s32.totalorder %s23, 1
      %p116 = scmp.ne.s32.totalorder %s111, %s113
      %p117 = scmp.eq.s32.totalorder %s23, 0
      %p118 = por %p116, %p117
      %p119 = scmp.ne.s32.totalorder %s111, %s113
      %p120 = scmp.eq.s32.totalorder %s28, 1
      %p121 = por %p119, %p120
      %p122 = scmp.ne.s32.totalorder %s113, %s114
      %p123 = scmp.eq.s32.totalorder %s28, 0
      %p124 = por %p122, %p123
      %p125 = scmp.ne.s32.totalorder %s113, %s114
      %p126 = scmp.eq.s32.totalorder %s29, 1
      %p127 = por %p125, %p126
      %p129 = scmp.ne.s32.totalorder %s114, %s128
      %p130 = scmp.eq.s32.totalorder %s29, 0
      %p131 = por %p129, %p130
      %s133 = sadd.s32 %s132, 1
      %p136 = scmp.eq.s32.totalorder %s23, 1
      %p137 = scmp.ne.s32.totalorder %s132, %s134
      %p138 = scmp.eq.s32.totalorder %s23, 0
      %p139 = por %p137, %p138
      %p140 = scmp.ne.s32.totalorder %s132, %s134
      %p141 = scmp.eq.s32.totalorder %s28, 1
      %p142 = por %p140, %p141
      %p143 = scmp.ne.s32.totalorder %s134, %s135
      %p144 = scmp.eq.s32.totalorder %s28, 0
      %p145 = por %p143, %p144
      %p146 = scmp.ne.s32.totalorder %s134, %s135
      %p147 = scmp.eq.s32.totalorder %s29, 1
      %p148 = por %p146, %p147
      %p150 = scmp.ne.s32.totalorder %s135, %s149
      %p151 = scmp.eq.s32.totalorder %s29, 0
      %p152 = por %p150, %p151
      %s153 = ssub.s32 %s30, %s42
      %p154 = scmp.eq.s32.totalorder %s153, 0
      %s156 = sadd.s32 %s155, 1
      %s157 = scalar_select %p154, %s155, %s156
      %p160 = pneg %p154
      %p161 = scmp.eq.s32.totalorder %s23, 1
      %p162 = por %p160, %p161
      %p163 = scmp.ne.s32.totalorder %s155, %s158
      %p164 = scmp.eq.s32.totalorder %s23, 0
      %p165 = por %p163, %p164
      %p166 = scmp.ne.s32.totalorder %s155, %s158
      %p167 = scmp.eq.s32.totalorder %s28, 1
      %p168 = por %p166, %p167
      %p169 = scmp.ne.s32.totalorder %s158, %s159
      %p170 = scmp.eq.s32.totalorder %s28, 0
      %p171 = por %p169, %p170
      %p172 = scmp.ne.s32.totalorder %s158, %s159
      %p173 = scmp.eq.s32.totalorder %s29, 1
      %p174 = por %p172, %p173
      %p176 = scmp.ne.s32.totalorder %s159, %s175
      %p177 = scmp.eq.s32.totalorder %s29, 0
      %p178 = por %p176, %p177
      %s179 = ssub.s32 %s30, %s42
      %s180 = ssub.s32 %s31, %s38
      %s181 = sor.u32 %s179, %s180
      %p182 = scmp.eq.s32.totalorder %s181, 0
      %s184 = sadd.s32 %s183, 1
      %s185 = scalar_select %p182, %s183, %s184
      %p188 = pneg %p182
      %p189 = scmp.eq.s32.totalorder %s23, 1
      %p190 = por %p188, %p189
      %p191 = scmp.ne.s32.totalorder %s183, %s186
      %p192 = scmp.eq.s32.totalorder %s23, 0
      %p193 = por %p191, %p192
      %p194 = scmp.ne.s32.totalorder %s183, %s186
      %p195 = scmp.eq.s32.totalorder %s28, 1
      %p196 = por %p194, %p195
      %p197 = scmp.ne.s32.totalorder %s186, %s187
      %p198 = scmp.eq.s32.totalorder %s28, 0
      %p199 = por %p197, %p198
      %p200 = scmp.ne.s32.totalorder %s186, %s187
      %p201 = scmp.eq.s32.totalorder %s29, 1
      %p202 = por %p200, %p201
      %p204 = scmp.ne.s32.totalorder %s187, %s203
      %p205 = scmp.eq.s32.totalorder %s29, 0
      %p206 = por %p204, %p205
      %p207 = scmp.le.s32.totalorder 1, %s23
      %p208 = scmp.lt.s32.totalorder %s23, 3
      %p209 = pnand %p207, %p208
      %p210 = pneg %p209
      // Predicated region
      $region9: #{tpu_custom_call.1} parent=5 // pred_check
        _
      $region10: #{tpu_custom_call.1} parent=5 // pred_check_branch
        %212 = sbr.rel (%p209) target = $region12
      $region11: #{tpu_custom_call.1} parent=5 // pred_region
        %s213 = ssub.s32 %s23, 1
        // Predicated region
        $region13: #{tpu_custom_call.1} parent=11 // pred_check
          %p214 = pneg %p82
        $region14: #{tpu_custom_call.1} parent=11 // pred_check_branch
          %216 = sbr.rel (%p214) target = $region16
        $region15: #{tpu_custom_call.1} parent=11 // pred_region
          %s218 = ssub.s32 320, 320
          %219 = vsyncadd [#allocation6], %s218
          %s220 = sshll.u32 [#allocation5], 4
          %s221 = int_to_ptr.vmem [resolvable:$true] %s220
          %226 = dma.hbm_to_vmem [thread:$0]  %s1, 320, %s221, [#allocation6], 64, 64, 4
        $region16: #{tpu_custom_call.1} parent=11 // pred_fallthru
          _
        // Predicated region
        $region17: #{tpu_custom_call.1} parent=11 // pred_check
          %p227 = pneg %p103
        $region18: #{tpu_custom_call.1} parent=11 // pred_check_branch
          %229 = sbr.rel (%p227) target = $region20
        $region19: #{tpu_custom_call.1} parent=11 // pred_region
          %s231 = ssub.s32 16, 16
          %232 = vsyncadd [#allocation6], %s231
          %s234 = sshll.u32 [#allocation7], 4
          %s235 = int_to_ptr.vmem [resolvable:$true] %s234
          %237 = dma.hbm_to_vmem [thread:$0]  %s2, 16, %s235, [#allocation6]
        $region20: #{tpu_custom_call.1} parent=11 // pred_fallthru
          _
        // Predicated region
        $region21: #{tpu_custom_call.1} parent=11 // pred_check
          %p238 = pneg %p124
        $region22: #{tpu_custom_call.1} parent=11 // pred_check_branch
          %240 = sbr.rel (%p238) target = $region24
        $region23: #{tpu_custom_call.1} parent=11 // pred_region
          %s242 = ssub.s32 16, 16
          %243 = vsyncadd [#allocation9], %s242
          %s245 = sshll.u32 [#allocation8], 4
          %s246 = int_to_ptr.vmem [resolvable:$true] %s245
          %248 = dma.hbm_to_vmem [thread:$0]  %s3, 16, %s246, [#allocation9]
        $region24: #{tpu_custom_call.1} parent=11 // pred_fallthru
          _
        // Predicated region
        $region25: #{tpu_custom_call.1} parent=11 // pred_check
          %p249 = pneg %p145
        $region26: #{tpu_custom_call.1} parent=11 // pred_check_branch
          %251 = sbr.rel (%p249) target = $region28
        $region27: #{tpu_custom_call.1} parent=11 // pred_region
          %s253 = ssub.s32 16, 16
          %254 = vsyncadd [#allocation9], %s253
          %s256 = sshll.u32 [#allocation10], 4
          %s257 = int_to_ptr.vmem [resolvable:$true] %s256
          %259 = dma.hbm_to_vmem [thread:$0]  %s4, 16, %s257, [#allocation9]
        $region28: #{tpu_custom_call.1} parent=11 // pred_fallthru
          _
      $region12: #{tpu_custom_call.1} parent=5 // pred_fallthru
        _
      %p260 = scmp.lt.s32.totalorder %s23, 2
      // Predicated region
      $region29: #{tpu_custom_call.1} parent=5 // pred_check
        %p261 = pneg %p260
      $region30: #{tpu_custom_call.1} parent=5 // pred_check_branch
        %263 = sbr.rel (%p261) target = $region32
      $region31: #{tpu_custom_call.1} parent=5 // pred_region
        // Predicated region
        $region33: #{tpu_custom_call.1} parent=31 // pred_check
          %p264 = pneg %p55
        $region34: #{tpu_custom_call.1} parent=31 // pred_check_branch
          %266 = sbr.rel (%p264) target = $region36
        $region35: #{tpu_custom_call.1} parent=31 // pred_region
          %s267 = sand.u32 %s45, 1
          %s268 = scalar_lea.sflag [#allocation3], %s267
          %s269 = sand.u32 %s45, 1
          %s270 = smul.addr %s269, 12
          %s271 = scalar_lea.vmem [#allocation2], %s270
          %s273 = ssub.s32 192, 192
          %274 = vsyncadd %s268, %s273
          %s275 = smul.addr %s30, 3
          %s276 = smul.addr %s275, 64
          %s277 = scalar_lea.hbm %s0, %s276
          %s278 = sshll.u32 %s271, 4
          %s279 = int_to_ptr.vmem [resolvable:$true] %s278
          %284 = dma.hbm_to_vmem [thread:$0]  %s277, 192, %s279, %s268, 64, 64, 4
        $region36: #{tpu_custom_call.1} parent=31 // pred_fallthru
          _
        // Predicated region
        $region37: #{tpu_custom_call.1} parent=31 // pred_check
          %p285 = pneg %p165
        $region38: #{tpu_custom_call.1} parent=31 // pred_check_branch
          %287 = sbr.rel (%p285) target = $region40
        $region39: #{tpu_custom_call.1} parent=31 // pred_region
          %s288 = sand.u32 %s155, 1
          %s289 = scalar_lea.sflag [#allocation12], %s288
          %s290 = sand.u32 %s155, 1
          %s291 = smul.addr %s290, 16
          %s292 = scalar_lea.vmem [#allocation11], %s291
          %s294 = ssub.s32 256, 256
          %295 = vsyncadd %s289, %s294
          %s296 = smul.addr %s30, 2
          %s297 = smul.addr %s296, 128
          %s298 = scalar_lea.hbm %s5, %s297
          %s299 = sshll.u32 %s292, 4
          %s300 = int_to_ptr.vmem [resolvable:$true] %s299
          %305 = dma.hbm_to_vmem [thread:$0]  %s298, 256, %s300, %s289, 128, 128, 8
        $region40: #{tpu_custom_call.1} parent=31 // pred_fallthru
          _
      $region32: #{tpu_custom_call.1} parent=5 // pred_fallthru
        _
      %p306 = scmp.le.s32.totalorder 1, %s23
      %p307 = scmp.lt.s32.totalorder %s23, 3
      %p308 = pnand %p306, %p307
      %p309 = pneg %p308
      // Predicated region
      $region41: #{tpu_custom_call.1} parent=5 // pred_check
        _
      $region42: #{tpu_custom_call.1} parent=5 // pred_check_branch
        %311 = sbr.rel (%p308) target = $region44
      $region43: #{tpu_custom_call.1} parent=5 // pred_region
        %s312 = ssub.s32 %s23, 1
        %s313 = sand.u32 %s48, 1
        %s314 = scalar_lea.sflag [#allocation3], %s313
        %s315 = sand.u32 %s48, 1
        %s316 = smul.addr %s315, 12
        %s317 = scalar_lea.vmem [#allocation2], %s316
        // Predicated region
        $region45: #{tpu_custom_call.1} parent=43 // pred_check
          %p318 = pneg %p61
        $region46: #{tpu_custom_call.1} parent=43 // pred_check_branch
          %320 = sbr.rel (%p318) target = $region48
        $region47: #{tpu_custom_call.1} parent=43 // pred_region
          %321 = dma.done %s314, 192
        $region48: #{tpu_custom_call.1} parent=43 // pred_fallthru
          _
        // Predicated region
        $region49: #{tpu_custom_call.1} parent=43 // pred_check
          %p322 = pneg %p82
        $region50: #{tpu_custom_call.1} parent=43 // pred_check_branch
          %324 = sbr.rel (%p322) target = $region52
        $region51: #{tpu_custom_call.1} parent=43 // pred_region
          %325 = dma.done [#allocation6], 320
        $region52: #{tpu_custom_call.1} parent=43 // pred_fallthru
          _
        // Predicated region
        $region53: #{tpu_custom_call.1} parent=43 // pred_check
          %p326 = pneg %p103
        $region54: #{tpu_custom_call.1} parent=43 // pred_check_branch
          %328 = sbr.rel (%p326) target = $region56
        $region55: #{tpu_custom_call.1} parent=43 // pred_region
          %329 = dma.done [#allocation6], 16
        $region56: #{tpu_custom_call.1} parent=43 // pred_fallthru
          _
        // Predicated region
        $region57: #{tpu_custom_call.1} parent=43 // pred_check
          %p330 = pneg %p124
        $region58: #{tpu_custom_call.1} parent=43 // pred_check_branch
          %332 = sbr.rel (%p330) target = $region60
        $region59: #{tpu_custom_call.1} parent=43 // pred_region
          %333 = dma.done [#allocation9], 16
        $region60: #{tpu_custom_call.1} parent=43 // pred_fallthru
          _
        // Predicated region
        $region61: #{tpu_custom_call.1} parent=43 // pred_check
          %p334 = pneg %p145
        $region62: #{tpu_custom_call.1} parent=43 // pred_check_branch
          %336 = sbr.rel (%p334) target = $region64
        $region63: #{tpu_custom_call.1} parent=43 // pred_region
          %337 = dma.done [#allocation9], 16
        $region64: #{tpu_custom_call.1} parent=43 // pred_fallthru
          _
        %s338 = sand.u32 %s158, 1
        %s339 = scalar_lea.sflag [#allocation12], %s338
        %s340 = sand.u32 %s158, 1
        %s341 = smul.addr %s340, 16
        %s342 = scalar_lea.vmem [#allocation11], %s341
        // Predicated region
        $region65: #{tpu_custom_call.1} parent=43 // pred_check
          %p343 = pneg %p171
        $region66: #{tpu_custom_call.1} parent=43 // pred_check_branch
          %345 = sbr.rel (%p343) target = $region68
        $region67: #{tpu_custom_call.1} parent=43 // pred_region
          %346 = dma.done %s339, 256
        $region68: #{tpu_custom_call.1} parent=43 // pred_fallthru
          _
        %s347 = sand.u32 %s48, 1
        %s348 = scalar_lea.sflag [#allocation3], %s347
        %s349 = sand.u32 %s48, 1
        %s350 = smul.addr %s349, 12
        %s351 = scalar_lea.vmem [#allocation2], %s350
        %p352 = pneg %p61
        %p353 = pneg %p58
        %p354 = pneg %p82
        %p355 = pneg %p79
        %p356 = pneg %p103
        %p357 = pneg %p100
        %p358 = pneg %p124
        %p359 = pneg %p121
        %p360 = pneg %p145
        %p361 = pneg %p142
        %s362 = sand.u32 %s158, 1
        %s363 = scalar_lea.sflag [#allocation12], %s362
        %s364 = sand.u32 %s158, 1
        %s365 = smul.addr %s364, 16
        %s366 = scalar_lea.vmem [#allocation11], %s365
        %p367 = pneg %p171
        %p368 = pneg %p168
        %p369 = pneg %p199
        %p370 = pneg %p196
        %s371 = sand.u32 %s186, 1
        %s372 = scalar_lea.sflag [#allocation4], %s371
        %s373 = sand.u32 %s186, 1
        %s374 = smul.addr %s373, 16
        %s375 = scalar_lea.vmem [#allocation13], %s374
        %s376 = smul.u32 2, %s33
        %s378 = smul.u32 %s33, 16
        %s379 = sshra.s32 %s378, 3
        %s380 = sand.u32 %s378, 7
        %s381 = smul.addr %s379, 4
        %s382 = scalar_lea.vmem %s317, %s381 [#allocation2]
        %v383 = vld [vmem:[%s382] sm:$0xf]
        %v384 = vld [vmem:[%s382 + $0x4] sm:$0xf]
        %v385 = vld [vmem:[%s382 + $0x8] sm:$0xf]
        %v386 = vld [vmem:[#allocation5] sm:$0xf]
        %s387 = scalar_lea.vmem [#allocation5], 4
        %v388 = vld [vmem:[%s387] sm:$0xf]
        %v392 = vunpack.c.l.b16 %v383
        %v393 = vunpack.c.l.b16 %v384
        %v394 = vunpack.c.l.b16 %v385
        %v395 = vpack.c.b16 %v393, %v392
        %v396 = vpack.c.b16 %v394, %v394
        %vm397 = vsmask.f32 7424
        %v399 = vshrl.u32 %v395, 16
        %v401 = vshll.u32 %v395, 16
        %v403 = vrot.slane %v401, 1
        %v404 = vor.u32 %v399, %v403
        %v406 = vshll.u32 %v396, 16
        %v408 = vrot.slane %v406, 1
        %v409 = vsel %vm397, %v404, %v408
        %vm410 = vcmask 64512
        %v412 = vsel %vm410, %v409, 0
        %vm414 = vcmask 1043456
        %v416 = vsel %vm414, %v388, 0
        %418 = vmatprep.subr.bf16.mxu0 0
        %419 = vmatpush1.bf16.msra.mxu0 %v416
        %420 = vmatprep.subr.bf16.mxu0 0
        %421 = vmatpush1.bf16.msra.mxu0 0
        %422 = vmatprep.subr.bf16.mxu0 0
        %423 = vmatpush1.bf16.msra.mxu0 0
        %424 = vmatprep.subr.bf16.mxu0 0
        %425 = vmatpush1.bf16.msra.mxu0 0
        %426 = vmatprep.subr.bf16.mxu0 0
        %427 = vmatpush1.bf16.msra.mxu0 0
        %428 = vmatprep.subr.bf16.mxu0 0
        %429 = vmatpush1.bf16.msra.mxu0 0
        %430 = vmatprep.subr.bf16.mxu0 0
        %431 = vmatpush1.bf16.msra.mxu0 0
        %432 = vmatprep.subr.bf16.mxu0 0
        %433 = vmatpush1.bf16.msra.mxu0 0
        %434 = vmatprep.subr.bf16.mxu0 0
        %435 = vmatpush1.bf16.msra.mxu0 0
        %436 = vmatprep.subr.bf16.mxu0 0
        %437 = vmatpush1.bf16.msra.mxu0 0
        %438 = vmatprep.subr.bf16.mxu0 0
        %439 = vmatpush1.bf16.msra.mxu0 0
        %440 = vmatprep.subr.bf16.mxu0 0
        %441 = vmatpush1.bf16.msra.mxu0 0
        %442 = vmatprep.subr.bf16.mxu0 0
        %443 = vmatpush1.bf16.msra.mxu0 0
        %444 = vmatprep.subr.bf16.mxu0 0
        %445 = vmatpush1.bf16.msra.mxu0 0
        %446 = vmatprep.subr.bf16.mxu0 0
        %447 = vmatpush1.bf16.msra.mxu0 0
        %448 = vmatprep.subr.bf16.mxu0 0
        %449 = vmatpush1.bf16.msra.mxu0 0
        %450 = vmatprep.mubr.bf16.mxu0 0
        %451 = vmatmul.mubr.bf16.gmra.mrb[0].mxu0 %v412
        %v452 = vpop.f32.mrb[0].mxu0
        %v453 = vadd.f32 0.0, %v452
        %v454 = vpop.f32.mrb[0].mxu0
        %v455 = vpop.f32.mrb[0].mxu0
        %v456 = vadd.f32 0.0, %v455
        %v457 = vpop.f32.mrb[0].mxu0
        %458 = vdwg.mxu0
        %v459 = vsel %vm410, %v395, 0
        %v462 = vsel %vm414, %v386, 0
        %464 = vmatprep.subr.bf16.mxu0 0
        %465 = vmatpush1.bf16.msra.mxu0 %v462
        %466 = vmatprep.subr.bf16.mxu0 0
        %467 = vmatpush1.bf16.msra.mxu0 0
        %468 = vmatprep.subr.bf16.mxu0 0
        %469 = vmatpush1.bf16.msra.mxu0 0
        %470 = vmatprep.subr.bf16.mxu0 0
        %471 = vmatpush1.bf16.msra.mxu0 0
        %472 = vmatprep.subr.bf16.mxu0 0
        %473 = vmatpush1.bf16.msra.mxu0 0
        %474 = vmatprep.subr.bf16.mxu0 0
        %475 = vmatpush1.bf16.msra.mxu0 0
        %476 = vmatprep.subr.bf16.mxu0 0
        %477 = vmatpush1.bf16.msra.mxu0 0
        %478 = vmatprep.subr.bf16.mxu0 0
        %479 = vmatpush1.bf16.msra.mxu0 0
        %480 = vmatprep.subr.bf16.mxu0 0
        %481 = vmatpush1.bf16.msra.mxu0 0
        %482 = vmatprep.subr.bf16.mxu0 0
        %483 = vmatpush1.bf16.msra.mxu0 0
        %484 = vmatprep.subr.bf16.mxu0 0
        %485 = vmatpush1.bf16.msra.mxu0 0
        %486 = vmatprep.subr.bf16.mxu0 0
        %487 = vmatpush1.bf16.msra.mxu0 0
        %488 = vmatprep.subr.bf16.mxu0 0
        %489 = vmatpush1.bf16.msra.mxu0 0
        %490 = vmatprep.subr.bf16.mxu0 0
        %491 = vmatpush1.bf16.msra.mxu0 0
        %492 = vmatprep.subr.bf16.mxu0 0
        %493 = vmatpush1.bf16.msra.mxu0 0
        %494 = vmatprep.subr.bf16.mxu0 0
        %495 = vmatpush1.bf16.msra.mxu0 0
        %496 = vmatprep.mubr.bf16.mxu0 0
        %497 = vmatmul.mubr.bf16.gmra.mrb[0].mxu0 %v459
        %v498 = vpop.f32.mrb[0].mxu0
        %v499 = vadd.f32 %v453, %v498
        %v500 = vpop.f32.mrb[0].mxu0
        %v501 = vpop.f32.mrb[0].mxu0
        %v502 = vadd.f32 %v456, %v501
        %v503 = vpop.f32.mrb[0].mxu0
        %504 = vdwg.mxu0
        %s505 = scalar_lea.vmem [#allocation5], 8
        %v506 = vld [vmem:[%s505] sm:$0xf]
        %vm507 = vcmask 1046528
        %v508 = vrot.slane %v395, 1
        %v509 = vrot.slane %v396, 1
        %v510 = vsel %vm507, %v508, %v509
        %v512 = vsel %vm410, %v510, 0
        %v515 = vsel %vm414, %v506, 0
        %517 = vmatprep.subr.bf16.mxu0 0
        %518 = vmatpush1.bf16.msra.mxu0 %v515
        %519 = vmatprep.subr.bf16.mxu0 0
        %520 = vmatpush1.bf16.msra.mxu0 0
        %521 = vmatprep.subr.bf16.mxu0 0
        %522 = vmatpush1.bf16.msra.mxu0 0
        %523 = vmatprep.subr.bf16.mxu0 0
        %524 = vmatpush1.bf16.msra.mxu0 0
        %525 = vmatprep.subr.bf16.mxu0 0
        %526 = vmatpush1.bf16.msra.mxu0 0
        %527 = vmatprep.subr.bf16.mxu0 0
        %528 = vmatpush1.bf16.msra.mxu0 0
        %529 = vmatprep.subr.bf16.mxu0 0
        %530 = vmatpush1.bf16.msra.mxu0 0
        %531 = vmatprep.subr.bf16.mxu0 0
        %532 = vmatpush1.bf16.msra.mxu0 0
        %533 = vmatprep.subr.bf16.mxu0 0
        %534 = vmatpush1.bf16.msra.mxu0 0
        %535 = vmatprep.subr.bf16.mxu0 0
        %536 = vmatpush1.bf16.msra.mxu0 0
        %537 = vmatprep.subr.bf16.mxu0 0
        %538 = vmatpush1.bf16.msra.mxu0 0
        %539 = vmatprep.subr.bf16.mxu0 0
        %540 = vmatpush1.bf16.msra.mxu0 0
        %541 = vmatprep.subr.bf16.mxu0 0
        %542 = vmatpush1.bf16.msra.mxu0 0
        %543 = vmatprep.subr.bf16.mxu0 0
        %544 = vmatpush1.bf16.msra.mxu0 0
        %545 = vmatprep.subr.bf16.mxu0 0
        %546 = vmatpush1.bf16.msra.mxu0 0
        %547 = vmatprep.subr.bf16.mxu0 0
        %548 = vmatpush1.bf16.msra.mxu0 0
        %549 = vmatprep.mubr.bf16.mxu0 0
        %550 = vmatmul.mubr.bf16.gmra.mrb[0].mxu0 %v512
        %v551 = vpop.f32.mrb[0].mxu0
        %v552 = vadd.f32 0.0, %v551
        %v553 = vpop.f32.mrb[0].mxu0
        %v554 = vpop.f32.mrb[0].mxu0
        %v555 = vadd.f32 0.0, %v554
        %v556 = vpop.f32.mrb[0].mxu0
        %557 = vdwg.mxu0
        %v558 = vadd.f32 %v499, %v552
        %v559 = vadd.f32 %v502, %v555
        %s560 = scalar_lea.vmem [#allocation5], 12
        %v561 = vld [vmem:[%s560] sm:$0xf]
        %vm562 = vsmask.f32 6400
        %v563 = vrot.slane %v399, 1
        %v564 = vrot.slane %v401, 2
        %v565 = vor.u32 %v563, %v564
        %v566 = vshrl.u32 %v396, 16
        %v568 = vrot.slane %v566, 1
        %v569 = vrot.slane %v406, 2
        %v570 = vor.u32 %v568, %v569
        %v571 = vsel %vm562, %v565, %v570
        %v573 = vsel %vm410, %v571, 0
        %v576 = vsel %vm414, %v561, 0
        %578 = vmatprep.subr.bf16.mxu0 0
        %579 = vmatpush1.bf16.msra.mxu0 %v576
        %580 = vmatprep.subr.bf16.mxu0 0
        %581 = vmatpush1.bf16.msra.mxu0 0
        %582 = vmatprep.subr.bf16.mxu0 0
        %583 = vmatpush1.bf16.msra.mxu0 0
        %584 = vmatprep.subr.bf16.mxu0 0
        %585 = vmatpush1.bf16.msra.mxu0 0
        %586 = vmatprep.subr.bf16.mxu0 0
        %587 = vmatpush1.bf16.msra.mxu0 0
        %588 = vmatprep.subr.bf16.mxu0 0
        %589 = vmatpush1.bf16.msra.mxu0 0
        %590 = vmatprep.subr.bf16.mxu0 0
        %591 = vmatpush1.bf16.msra.mxu0 0
        %592 = vmatprep.subr.bf16.mxu0 0
        %593 = vmatpush1.bf16.msra.mxu0 0
        %594 = vmatprep.subr.bf16.mxu0 0
        %595 = vmatpush1.bf16.msra.mxu0 0
        %596 = vmatprep.subr.bf16.mxu0 0
        %597 = vmatpush1.bf16.msra.mxu0 0
        %598 = vmatprep.subr.bf16.mxu0 0
        %599 = vmatpush1.bf16.msra.mxu0 0
        %600 = vmatprep.subr.bf16.mxu0 0
        %601 = vmatpush1.bf16.msra.mxu0 0
        %602 = vmatprep.subr.bf16.mxu0 0
        %603 = vmatpush1.bf16.msra.mxu0 0
        %604 = vmatprep.subr.bf16.mxu0 0
        %605 = vmatpush1.bf16.msra.mxu0 0
        %606 = vmatprep.subr.bf16.mxu0 0
        %607 = vmatpush1.bf16.msra.mxu0 0
        %608 = vmatprep.subr.bf16.mxu0 0
        %609 = vmatpush1.bf16.msra.mxu0 0
        %610 = vmatprep.mubr.bf16.mxu0 0
        %611 = vmatmul.mubr.bf16.gmra.mrb[0].mxu0 %v573
        %v612 = vpop.f32.mrb[0].mxu0
        %v613 = vadd.f32 0.0, %v612
        %v614 = vpop.f32.mrb[0].mxu0
        %v615 = vpop.f32.mrb[0].mxu0
        %v616 = vadd.f32 0.0, %v615
        %v617 = vpop.f32.mrb[0].mxu0
        %618 = vdwg.mxu0
        %v619 = vadd.f32 %v558, %v613
        %v620 = vadd.f32 %v559, %v616
        %s621 = scalar_lea.vmem [#allocation5], 16
        %v622 = vld [vmem:[%s621] sm:$0xf]
        %vm623 = vcmask 1045504
        %v624 = vrot.slane %v395, 2
        %v625 = vrot.slane %v396, 2
        %v626 = vsel %vm623, %v624, %v625
        %v628 = vsel %vm410, %v626, 0
        %v631 = vsel %vm414, %v622, 0
        %633 = vmatprep.subr.bf16.mxu0 0
        %634 = vmatpush1.bf16.msra.mxu0 %v631
        %635 = vmatprep.subr.bf16.mxu0 0
        %636 = vmatpush1.bf16.msra.mxu0 0
        %637 = vmatprep.subr.bf16.mxu0 0
        %638 = vmatpush1.bf16.msra.mxu0 0
        %639 = vmatprep.subr.bf16.mxu0 0
        %640 = vmatpush1.bf16.msra.mxu0 0
        %641 = vmatprep.subr.bf16.mxu0 0
        %642 = vmatpush1.bf16.msra.mxu0 0
        %643 = vmatprep.subr.bf16.mxu0 0
        %644 = vmatpush1.bf16.msra.mxu0 0
        %645 = vmatprep.subr.bf16.mxu0 0
        %646 = vmatpush1.bf16.msra.mxu0 0
        %647 = vmatprep.subr.bf16.mxu0 0
        %648 = vmatpush1.bf16.msra.mxu0 0
        %649 = vmatprep.subr.bf16.mxu0 0
        %650 = vmatpush1.bf16.msra.mxu0 0
        %651 = vmatprep.subr.bf16.mxu0 0
        %652 = vmatpush1.bf16.msra.mxu0 0
        %653 = vmatprep.subr.bf16.mxu0 0
        %654 = vmatpush1.bf16.msra.mxu0 0
        %655 = vmatprep.subr.bf16.mxu0 0
        %656 = vmatpush1.bf16.msra.mxu0 0
        %657 = vmatprep.subr.bf16.mxu0 0
        %658 = vmatpush1.bf16.msra.mxu0 0
        %659 = vmatprep.subr.bf16.mxu0 0
        %660 = vmatpush1.bf16.msra.mxu0 0
        %661 = vmatprep.subr.bf16.mxu0 0
        %662 = vmatpush1.bf16.msra.mxu0 0
        %663 = vmatprep.subr.bf16.mxu0 0
        %664 = vmatpush1.bf16.msra.mxu0 0
        %665 = vmatprep.mubr.bf16.mxu0 0
        %666 = vmatmul.mubr.bf16.gmra.mrb[0].mxu0 %v628
        %v667 = vpop.f32.mrb[0].mxu0
        %v668 = vadd.f32 0.0, %v667
        %v669 = vpop.f32.mrb[0].mxu0
        %v670 = vpop.f32.mrb[0].mxu0
        %v671 = vadd.f32 0.0, %v670
        %v672 = vpop.f32.mrb[0].mxu0
        %673 = vdwg.mxu0
        %v674 = vadd.f32 %v619, %v668
        %v675 = vadd.f32 %v620, %v671
        %v676 = vld [vmem:[#allocation7] sm:$0x1]
        %v678 = vlaneseq
        %v679 = vshrl.u32 %v678, 7
        %v680 = vsub.s32 0, %v679
        %v681 = vrot.slane %v676, %v680
        %v683 = vadd.f32 %v674, %v681
        %v684 = vadd.f32 %v675, %v681
        %v685 = vmax.f32 %v683, 0.0
        %v686 = vmax.f32 %v684, 0.0
        %687 = vadd.xlane.f32.xlu0 %v685
        %v688 = vpop.xlane.xlu0 %687
        %689 = vadd.xlane.f32.xlu0 %v686
        %v690 = vpop.xlane.xlu0 %689
        %v691 = vmul.f32 %v688, 0.0625
        %v692 = vmul.f32 %v690, 0.0625
        %v693 = vsub.f32 %v685, %v691
        %v694 = vsub.f32 %v686, %v692
        %v695 = vlaneseq
        %v696 = vand.u32 %v695, 127
        %vm697 = vcmp.lt.s32.totalorder %v696, 16
        %v698 = vsel %vm697, 1, 0
        %v699 = vcvt.s32.f32 %v698
        %v700 = vmul.f32 %v693, %v699
        %v701 = vmul.f32 %v694, %v699
        %v702 = vmul.f32 %v700, %v700
        %v703 = vmul.f32 %v701, %v701
        %704 = vadd.xlane.f32.xlu0 %v702
        %v705 = vpop.xlane.xlu0 %704
        %706 = vadd.xlane.f32.xlu0 %v703
        %v707 = vpop.xlane.xlu0 %706
        %v708 = vmul.f32 %v705, 0.0625
        %v709 = vmul.f32 %v707, 0.0625
        %v710 = vadd.f32 %v708, 1e-05
        %v711 = vadd.f32 %v709, 1e-05
        %v712 = vrsqrt.pop %v710
        %v713 = vrsqrt.pop %v711
        %v714 = vmul.f32 %v693, %v712
        %v715 = vmul.f32 %v694, %v713
        %s716 = scalar_lea.vmem %s342, %s378 [#allocation11]
        %v717 = vld [vmem:[%s716] sm:$0xff]
        %v718 = vld [vmem:[%s716 + $0x8] sm:$0xff]
        %v719 = vld [vmem:[#allocation8] sm:$0x1]
        %v721 = vlaneseq
        %v722 = vshrl.u32 %v721, 7
        %v723 = vsub.s32 0, %v722
        %v724 = vrot.slane %v719, %v723
        %v726 = vmul.f32 %v714, %v724
        %v727 = vmul.f32 %v715, %v724
        %v728 = vld [vmem:[#allocation10] sm:$0x1]
        %v730 = vlaneseq
        %v731 = vshrl.u32 %v730, 7
        %v732 = vsub.s32 0, %v731
        %v733 = vrot.slane %v728, %v732
        %v735 = vadd.f32 %v726, %v733
        %v736 = vadd.f32 %v727, %v733
        %738 = vset.pattern.permute.xlu0 0
        %739 = vperm.xlu0 %738, %v717
        %v740 = vpop.permute.xlu0 %739
        %743 = vset.pattern.permute.xlu0 0
        %744 = vperm.xlu0 %743, %v718
        %v745 = vpop.permute.xlu0 %744
        %v747 = vmul.f32 %v735, %v740
        %v748 = vmul.f32 %v736, %v745
        %749 = vst [vmem:[%s375] sm:$0xff] %v747
        %750 = vst [vmem:[%s375 + $0x8] sm:$0xff] %v748
        %s751 = sand.u32 %s186, 1
        %s752 = scalar_lea.sflag [#allocation4], %s751
        %s753 = sand.u32 %s186, 1
        %s754 = smul.addr %s753, 16
        %s755 = scalar_lea.vmem [#allocation13], %s754
        // Predicated region
        $region69: #{tpu_custom_call.1} parent=43 // pred_check
          %p756 = pneg %p196
        $region70: #{tpu_custom_call.1} parent=43 // pred_check_branch
          %758 = sbr.rel (%p756) target = $region72
        $region71: #{tpu_custom_call.1} parent=43 // pred_region
          %s759 = smul.u32 2, %s33
          %s761 = ssub.s32 256, 256
          %762 = vsyncadd %s752, %s761
          %s763 = smul.addr %s32, 2
          %s764 = sadd.s32 %s759, %s763
          %s765 = smul.addr %s764, 128
          %s766 = scalar_lea.hbm %s6, %s765
          %s767 = sshll.u32 %s755, 4
          %s768 = int_to_ptr.vmem [resolvable:$true] %s767
          %773 = dma.vmem_to_hbm [thread:$0]  %s768, 256, %s766, %s752, 128, 128, 8
        $region72: #{tpu_custom_call.1} parent=43 // pred_fallthru
          _
      $region44: #{tpu_custom_call.1} parent=5 // pred_fallthru
        _
      %p774 = scmp.le.s32.totalorder 2, %s23
      // Predicated region
      $region73: #{tpu_custom_call.1} parent=5 // pred_check
        %p775 = pneg %p774
      $region74: #{tpu_custom_call.1} parent=5 // pred_check_branch
        %777 = sbr.rel (%p775) target = $region76
      $region75: #{tpu_custom_call.1} parent=5 // pred_region
        %s778 = ssub.s32 %s23, 2
        // Predicated region
        $region77: #{tpu_custom_call.1} parent=75 // pred_check
          %p779 = pneg %p202
        $region78: #{tpu_custom_call.1} parent=75 // pred_check_branch
          %781 = sbr.rel (%p779) target = $region80
        $region79: #{tpu_custom_call.1} parent=75 // pred_region
          %s782 = sand.u32 %s187, 1
          %s783 = scalar_lea.sflag [#allocation4], %s782
          %s784 = sand.u32 %s187, 1
          %s785 = smul.addr %s784, 16
          %s786 = scalar_lea.vmem [#allocation13], %s785
          %787 = dma.done %s783, 256
        $region80: #{tpu_custom_call.1} parent=75 // pred_fallthru
          _
      $region76: #{tpu_custom_call.1} parent=5 // pred_fallthru
        _
    $region6: #{tpu_custom_call.1} parent=1 // loop_footer
      %s27 = sadd.s32 1, %s23
    $region7: #{tpu_custom_call.1} parent=1 // loop_footer_branch
      %22 = sbr.rel target = $region3
    $region8: #{tpu_custom_call.1} parent=1 // loop_exit
      _
    %788 = vsyncpa [#allocation3], 1
    %s789 = scalar_lea.sflag [#allocation3], 1
    %790 = vsyncpa %s789, 1
    %791 = vsyncpa [#allocation6], 1
    %792 = vsyncpa [#allocation9], 1
    %793 = vsyncpa [#allocation12], 1
    %s794 = scalar_lea.sflag [#allocation12], 1
    %795 = vsyncpa %s794, 1
    %796 = vsyncpa [#allocation4], 1
    %s797 = scalar_lea.sflag [#allocation4], 1
    %798 = vsyncpa %s797, 1

</llo_original>
